<compile_context>
chip_gen: v7x
topology: tpu7x:2x2x1
jax: 0.10.0
libtpu: 0.0.40
codegen_flags: <defaults>
</compile_context>

<pallas_src>
import functools

import jax
import jax.numpy as jnp
from jax import lax
from jax.experimental import pallas as pl
from jax.experimental.pallas import tpu as pltpu

_LANES = 512  # 4 * 128 lanes -> lane-dense rows when the flat size allows it.


def _round_up(n, m):
    return (n + m - 1) // m * m


def _round_down(n, m):
    return n // m * m


def _device_kind():
    try:
        return jax.devices()[0].device_kind.lower()
    except Exception:
        return ""


def _sse_kernel(x_ref, t_ref, o_ref, *, rows, tile_r, sub_r, blocks_per_split):
    """Accumulate sum((x-t)^2) of this (tile_r, cols) block into the resident
    (sub_r, cols) partial-sum accumulator for the current split."""
    c = pl.program_id(0)
    i = pl.program_id(1)

    @pl.when(i == 0)
    def _():
        o_ref[...] = jnp.zeros_like(o_ref)

    cols = o_ref.shape[-1]
    # Logical (unclamped) first row of this block.  Rows >= `rows` are masked
    # out, which also neutralizes the partial last block and any clamped
    # fully-out-of-range block of the split axis.
    row0 = (c * blocks_per_split + i) * tile_r
    row_iota = lax.broadcasted_iota(jnp.int32, (sub_r, cols), 0)

    def chunk(r_start):
        d = (x_ref[pl.ds(r_start, sub_r), :].astype(jnp.float32)
             - t_ref[pl.ds(r_start, sub_r), :].astype(jnp.float32))
        valid = (row0 + r_start + row_iota) < rows
        return jnp.where(valid, d * d, 0.0)

    n_chunks = tile_r // sub_r
    if n_chunks == 1:
        acc = chunk(0)
    else:
        def body(j, acc):
            r_start = pl.multiple_of(j * sub_r, sub_r)
            return acc + chunk(r_start)

        acc = lax.fori_loop(0, n_chunks, body,
                            jnp.zeros((sub_r, cols), jnp.float32), unroll=8)

    o_ref[...] += acc


def loss_mse(inp, target, *, num_splits=None, target_block_bytes=None,
             vmem_limit_bytes=48 << 20):
    """Returns sum((inp - target)**2) as a scalar, matching LossMSE.forward."""
    assert inp.shape == target.shape, "input/target shape mismatch"

    kind = _device_kind()
    if num_splits is None:
        # v7x has 2 TensorCores per chip; v5e/v6e have 1.
        num_splits = 2 if "v7" in kind else 1
    if target_block_bytes is None:
        # ~4 MiB per input block on v6e/v7x; 2 MiB keeps v5e's VMEM comfortable.
        target_block_bytes = (2 << 20) if "v5" in kind else (4 << 20)

    total = int(inp.size)
    if total == 0:
        return jnp.zeros((), jnp.float32)

    # Free (contiguous, no-copy) 2-D views; no host-side data padding.
    if total % _LANES == 0:
        rows, cols = total // _LANES, _LANES
    elif inp.ndim >= 2:
        cols = int(inp.shape[-1])
        rows = total // cols
    else:
        rows, cols = 1, total
    x2 = jnp.reshape(inp, (rows, cols))
    t2 = jnp.reshape(target, (rows, cols))

    itemsize = jnp.dtype(inp.dtype).itemsize
    packing = max(1, 4 // itemsize)
    sub_r = 8 * packing                       # one native sublane tile per chunk
    vmem_row_bytes = _round_up(cols, 128) * max(itemsize, 1)

    if rows <= sub_r:
        # Tiny inputs: a single full-extent block (always a legal block shape).
        tile_r = sub_r = rows
    else:
        tile_r = _round_down(max(target_block_bytes // vmem_row_bytes, sub_r), sub_r)
        tile_r = max(sub_r, min(tile_r, _round_down(rows, sub_r)))
        # TODO(synk): pathologically wide, non-128-aligned last dims (single
        # sub_r-row block > VMEM) would additionally need column tiling.

    nb = pl.cdiv(rows, tile_r)                # row blocks; last one may be partial
    num_splits = max(1, min(num_splits, nb))
    blocks_per_split = pl.cdiv(nb, num_splits)

    kernel = functools.partial(_sse_kernel, rows=rows, tile_r=tile_r,
                               sub_r=sub_r, blocks_per_split=blocks_per_split)

    def in_map(c, i):
        # Clamp fully-out-of-range logical blocks onto the last real block; the
        # in-kernel row mask (computed from the *logical* index) zeroes them.
        return (jnp.minimum(c * blocks_per_split + i, nb - 1), 0)

    partials = pl.pallas_call(
        kernel,
        out_shape=jax.ShapeDtypeStruct((num_splits * sub_r, cols), jnp.float32),
        grid_spec=pltpu.PrefetchScalarGridSpec(
            num_scalar_prefetch=0,
            grid=(num_splits, blocks_per_split),
            in_specs=[
                pl.BlockSpec((tile_r, cols), in_map),
                pl.BlockSpec((tile_r, cols), in_map),
            ],
            # Per-split partial-sum tile, resident across the inner (reduction)
            # grid axis.
            out_specs=pl.BlockSpec((sub_r, cols), lambda c, i: (c, 0)),
        ),
        compiler_params=pltpu.CompilerParams(
            dimension_semantics=("parallel", "arbitrary"),
            vmem_limit_bytes=vmem_limit_bytes,
        ),
    )(x2, t2)

    # Tiny final reduce of the per-split partials -> scalar.
    return jnp.sum(partials)


if __name__ == "__main__":
    key = jax.random.PRNGKey(0)
    k1, k2, k3, k4, k5, k6 = jax.random.split(key, 6)

    # Shapes consistent with the module's 2-D usage: batch=16, hidden=128.
    x = jax.random.normal(k1, (16, 128), dtype=jnp.float32)
    t = jax.random.normal(k2, (16, 128), dtype=jnp.float32)
    loss = loss_mse(x, t)
    jax.block_until_ready(loss)
    ref = jnp.sum((x - t) ** 2)
    assert jnp.allclose(loss, ref, rtol=1e-5, atol=1e-5), (loss, ref)

    # Non-aligned shape: exercises the no-copy (rows, last_dim) view path.
    x2 = jax.random.normal(k3, (7, 33), dtype=jnp.float32)
    t2 = jax.random.normal(k4, (7, 33), dtype=jnp.float32)
    loss2 = loss_mse(x2, t2)
    jax.block_until_ready(loss2)
    ref2 = jnp.sum((x2 - t2) ** 2)
    assert jnp.allclose(loss2, ref2, rtol=1e-5, atol=1e-5), (loss2, ref2)

    # Exercises the partial last block + in-kernel row mask + fori_loop path.
    x3 = jax.random.normal(k5, (37, 40), dtype=jnp.float32)
    t3 = jax.random.normal(k6, (37, 40), dtype=jnp.float32)
    loss3 = loss_mse(x3, t3)
    jax.block_until_ready(loss3)
    ref3 = jnp.sum((x3 - t3) ** 2)
    assert jnp.allclose(loss3, ref3, rtol=1e-5, atol=1e-5), (loss3, ref3)

    print("KERNEL_OK")
</pallas_src>

<mosaic_0001>
module attributes {stable_mosaic.version = 11 : i64} {
  func.func @_sse_kernel(%arg0: i32, %arg1: i32, %arg2: memref<4x512xf32, #tpu.memory_space<vmem>>, %arg3: memref<4x512xf32, #tpu.memory_space<vmem>>, %arg4: memref<4x512xf32, #tpu.memory_space<vmem>>) attributes {dimension_semantics = [#tpu.dimension_semantics<parallel>, #tpu.dimension_semantics<arbitrary>], iteration_bounds = array<i64: 1, 1>, scalar_prefetch = 0 : i64, scratch_operands = 0 : i64, tpu.core_type = #tpu.core_type<tc>, window_params = [{transform_indices = @transform_0, window_bounds = array<i64: 4, 512>}, {transform_indices = @transform_1, window_bounds = array<i64: 4, 512>}, {transform_indices = @transform_2, window_bounds = array<i64: 4, 512>}]} {
    %c0_i32 = arith.constant 0 : i32
    %0 = arith.cmpi eq, %arg1, %c0_i32 : i32
    %1 = arith.extui %0 : i1 to i32
    %c0_i32_0 = arith.constant 0 : i32
    %2 = arith.cmpi ne, %1, %c0_i32_0 : i32
    scf.if %2 {
      %cst_10 = arith.constant 0.000000e+00 : f32
      %21 = vector.broadcast %cst_10 : f32 to vector<4x512xf32>
      %c0_11 = arith.constant 0 : index
      %c0_12 = arith.constant 0 : index
      %22 = vector.load %arg4[%c0_11, %c0_12] : memref<4x512xf32, #tpu.memory_space<vmem>>, vector<4x512xf32>
      tpu.vector_store %arg4[%c0_11, %c0_12], %21 {strides = array<i32>} : memref<4x512xf32, #tpu.memory_space<vmem>>, vector<4x512xf32>,
    } else {
    }
    %c1_i32 = arith.constant 1 : i32
    %3 = arith.muli %arg0, %c1_i32 : i32
    %4 = arith.addi %3, %arg1 : i32
    %c4_i32 = arith.constant 4 : i32
    %5 = arith.muli %4, %c4_i32 : i32
    %6 = tpu.iota {dimensions = array<i32: 0>} : vector<4x512xi32>
    %c0 = arith.constant 0 : index
    %c0_1 = arith.constant 0 : index
    %7 = vector.load %arg2[%c0, %c0_1] : memref<4x512xf32, #tpu.memory_space<vmem>>, vector<4x512xf32>
    %c0_2 = arith.constant 0 : index
    %c0_3 = arith.constant 0 : index
    %8 = vector.load %arg3[%c0_2, %c0_3] : memref<4x512xf32, #tpu.memory_space<vmem>>, vector<4x512xf32>
    %9 = arith.subf %7, %8 : vector<4x512xf32>
    %c0_i32_4 = arith.constant 0 : i32
    %10 = arith.addi %5, %c0_i32_4 : i32
    %11 = vector.broadcast %10 : i32 to vector<4x512xi32>
    %12 = arith.addi %11, %6 : vector<4x512xi32>
    %c4_i32_5 = arith.constant 4 : i32
    %13 = vector.broadcast %c4_i32_5 : i32 to vector<4x512xi32>
    %14 = arith.cmpi slt, %12, %13 : vector<4x512xi32>
    %15 = arith.mulf %9, %9 : vector<4x512xf32>
    %cst = arith.constant 0.000000e+00 : f32
    %16 = vector.broadcast %cst : f32 to vector<4x512xf32>
    %17 = arith.select %14, %15, %16 : vector<4x512xi1>, vector<4x512xf32>
    %c0_6 = arith.constant 0 : index
    %c0_7 = arith.constant 0 : index
    %18 = vector.load %arg4[%c0_6, %c0_7] : memref<4x512xf32, #tpu.memory_space<vmem>>, vector<4x512xf32>
    %19 = arith.addf %18, %17 : vector<4x512xf32>
    %c0_8 = arith.constant 0 : index
    %c0_9 = arith.constant 0 : index
    %20 = vector.load %arg4[%c0_8, %c0_9] : memref<4x512xf32, #tpu.memory_space<vmem>>, vector<4x512xf32>
    tpu.vector_store %arg4[%c0_8, %c0_9], %19 {strides = array<i32>} : memref<4x512xf32, #tpu.memory_space<vmem>>, vector<4x512xf32>,
    return
  }
  func.func @transform_0(%arg0: i32, %arg1: i32) -> (i32, i32) {
    %c1_i32 = arith.constant 1 : i32
    %0 = arith.muli %arg0, %c1_i32 : i32
    %1 = arith.addi %0, %arg1 : i32
    %c0_i32 = arith.constant 0 : i32
    %2 = arith.minsi %1, %c0_i32 : i32
    %c0_i32_0 = arith.constant 0 : i32
    %c0_i32_1 = arith.constant 0 : i32
    return %2, %c0_i32_0 : i32, i32
  }
  func.func @transform_1(%arg0: i32, %arg1: i32) -> (i32, i32) {
    %c1_i32 = arith.constant 1 : i32
    %0 = arith.muli %arg0, %c1_i32 : i32
    %1 = arith.addi %0, %arg1 : i32
    %c0_i32 = arith.constant 0 : i32
    %2 = arith.minsi %1, %c0_i32 : i32
    %c0_i32_0 = arith.constant 0 : i32
    %c0_i32_1 = arith.constant 0 : i32
    return %2, %c0_i32_0 : i32, i32
  }
  func.func @transform_2(%arg0: i32, %arg1: i32) -> (i32, i32) {
    %c0_i32 = arith.constant 0 : i32
    %c0_i32_0 = arith.constant 0 : i32
    return %arg0, %c0_i32 : i32, i32
  }
}

</mosaic_0001>

<llo_original>
// kernel: tpu_custom_call.1
$region0: #{tpu_custom_call.1}
  #allocation0 [shape = 'u32[]', space=smem, size = 0x4, offset = 0x4, fixed_abs, tag = 'smem constant byte address 0x4 - core index']
  #allocation1 [shape = 'u32[144,128]{1,0:T(1,128)}', space=vmem, size = 0x12000, scoped, tag = 'internal scratch']
  %s0 = inlined_call_operand.hbm [shape: f32[4,512], index: 0, kind: input, shape index: {}]
  %s1 = inlined_call_operand.hbm [shape: f32[4,512], index: 1, kind: input, shape index: {}]
  %s2 = inlined_call_operand.hbm [shape: f32[4,512], index: 2, kind: output, shape index: {}]
  %s3 = sld [smem:[#allocation0]]
  $region30: #{tpu_custom_call.1} parent=0
    _
  %s5 = ssub.s32 1, %s3
  %s6 = scalar_select 0, %s5, %s3
  $region1: #{tpu_custom_call.1} parent=0
    #allocation2 [shape = 'u8[8192]{0}', space=vmem, size = 0x2000, scoped, tag = 'input window, operand 0, single buffered']
    #allocation3 [shape = 's32[1]{0}', space=sflag, size = 0x4, scoped, tag = 'scoped memory for tpu_custom_call.1']
    #allocation4 [shape = 's32[1]{0}', space=sflag, size = 0x4, scoped, tag = 'scoped memory for tpu_custom_call.1']
    #allocation5 [shape = 'u8[8192]{0}', space=vmem, size = 0x2000, scoped, tag = 'input window, operand 1, single buffered']
    #allocation6 [shape = 's32[1]{0}', space=sflag, size = 0x4, scoped, tag = 'scoped memory for tpu_custom_call.1']
    #allocation7 [shape = 'u8[8192]{0}', space=vmem, size = 0x2000, scoped, tag = 'output window, operand 0, single buffered']
    %7 = vsyncpa [#allocation3], 0
    %8 = vsyncpa [#allocation6], 0
    %9 = vsyncpa [#allocation4], 0
    // Predicated region
    $region2: #{tpu_custom_call.1} parent=1 // pred_check
      _
    $region3: #{tpu_custom_call.1} parent=1 // pred_check_branch
      %11 = sbr.rel (0) target = $region5
    $region4: #{tpu_custom_call.1} parent=1 // pred_region
      %s12 = sadd.s32 0, 0
      %p13 = scmp.lt.s32.totalorder %s12, 0
      %s14 = scalar_select %p13, %s12, 0
      %s16 = ssub.s32 256, 256
      %17 = vsyncadd [#allocation3], %s16
      %s18 = smul.addr %s14, 4
      %s19 = smul.addr %s18, 64
      %s20 = scalar_lea.hbm %s0, %s19
      %s22 = sshll.u32 [#allocation2], 4
      %s23 = int_to_ptr.vmem [resolvable:$true] %s22
      %25 = dma.hbm_to_vmem [thread:$0]  %s20, 256, %s23, [#allocation3]
    $region5: #{tpu_custom_call.1} parent=1 // pred_fallthru
      _
    // Predicated region
    $region6: #{tpu_custom_call.1} parent=1 // pred_check
      _
    $region7: #{tpu_custom_call.1} parent=1 // pred_check_branch
      %27 = sbr.rel (0) target = $region9
    $region8: #{tpu_custom_call.1} parent=1 // pred_region
      %s28 = sadd.s32 0, 0
      %p29 = scmp.lt.s32.totalorder %s28, 0
      %s30 = scalar_select %p29, %s28, 0
      %s32 = ssub.s32 256, 256
      %33 = vsyncadd [#allocation6], %s32
      %s34 = smul.addr %s30, 4
      %s35 = smul.addr %s34, 64
      %s36 = scalar_lea.hbm %s1, %s35
      %s38 = sshll.u32 [#allocation5], 4
      %s39 = int_to_ptr.vmem [resolvable:$true] %s38
      %41 = dma.hbm_to_vmem [thread:$0]  %s36, 256, %s39, [#allocation6]
    $region9: #{tpu_custom_call.1} parent=1 // pred_fallthru
      _
    // Predicated region
    $region10: #{tpu_custom_call.1} parent=1 // pred_check
      _
    $region11: #{tpu_custom_call.1} parent=1 // pred_check_branch
      %43 = sbr.rel (0) target = $region13
    $region12: #{tpu_custom_call.1} parent=1 // pred_region
      %44 = dma.done [#allocation3], 256
    $region13: #{tpu_custom_call.1} parent=1 // pred_fallthru
      _
    // Predicated region
    $region14: #{tpu_custom_call.1} parent=1 // pred_check
      _
    $region15: #{tpu_custom_call.1} parent=1 // pred_check_branch
      %46 = sbr.rel (0) target = $region17
    $region16: #{tpu_custom_call.1} parent=1 // pred_region
      %47 = dma.done [#allocation6], 256
    $region17: #{tpu_custom_call.1} parent=1 // pred_fallthru
      _
    %s48 = sadd.s32 0, 0
    %p49 = scmp.lt.s32.totalorder %s48, 0
    %s50 = scalar_select %p49, %s48, 0
    %s51 = sadd.s32 0, 0
    %p52 = scmp.lt.s32.totalorder %s51, 0
    %s53 = scalar_select %p52, %s51, 0
    %p54 = scmp.eq.s32.totalorder 0, 0
    // Predicated region
    $region18: #{tpu_custom_call.1} parent=1 // pred_check
      %p55 = pneg %p54
    $region19: #{tpu_custom_call.1} parent=1 // pred_check_branch
      %57 = sbr.rel (%p55) target = $region21
    $region20: #{tpu_custom_call.1} parent=1 // pred_region
      %58 = vst [vmem:[#allocation7] sm:$0xff] 0.0
      %59 = vst [vmem:[#allocation7 + $0x8] sm:$0xff] 0.0
    $region21: #{tpu_custom_call.1} parent=1 // pred_fallthru
      _
    %s60 = sadd.s32 0, 0
    %s61 = smul.u32 %s60, 4
    %v62 = vlaneseq
    %v63 = vshrl.u32 %v62, 7
    %v64 = vld [vmem:[#allocation2] sm:$0xff]
    %v65 = vld [vmem:[#allocation2 + $0x8] sm:$0xff]
    %v66 = vld [vmem:[#allocation5] sm:$0xff]
    %v67 = vld [vmem:[#allocation5 + $0x8] sm:$0xff]
    %v68 = vsub.f32 %v64, %v66
    %v69 = vsub.f32 %v65, %v67
    %v70 = vstv %s61
    %v71 = vadd.s32 %v70, %v63
    %vm72 = vcmp.lt.s32.totalorder %v71, 4
    %v73 = vmul.f32 %v68, %v68
    %v74 = vmul.f32 %v69, %v69
    %v77 = vcombine.high %v73, %v73
    %v78 = vcombine.high %v74, %v74
    %v81 = vsel %vm72, %v73, 0.0
    %v82 = vsel %vm72, %v77, 0.0
    %v83 = vsel %vm72, %v74, 0.0
    %v84 = vsel %vm72, %v78, 0.0
    %v85 = vld [vmem:[#allocation7] sm:$0xff]
    %v86 = vld [vmem:[#allocation7 + $0x8] sm:$0xff]
    %v91 = vcombine.low %v81, %v82
    %v92 = vcombine.low %v83, %v84
    %v95 = vadd.f32 %v85, %v91
    %v96 = vadd.f32 %v86, %v92
    %97 = vst [vmem:[#allocation7] sm:$0xff] %v95
    %98 = vst [vmem:[#allocation7 + $0x8] sm:$0xff] %v96
    // Predicated region
    $region22: #{tpu_custom_call.1} parent=1 // pred_check
      _
    $region23: #{tpu_custom_call.1} parent=1 // pred_check_branch
      %100 = sbr.rel (0) target = $region25
    $region24: #{tpu_custom_call.1} parent=1 // pred_region
      %s102 = ssub.s32 256, 256
      %103 = vsyncadd [#allocation4], %s102
      %s105 = sshll.u32 [#allocation7], 4
      %s106 = int_to_ptr.vmem [resolvable:$true] %s105
      %108 = dma.vmem_to_hbm [thread:$0]  %s106, 256, %s2, [#allocation4]
    $region25: #{tpu_custom_call.1} parent=1 // pred_fallthru
      _
    // Predicated region
    $region26: #{tpu_custom_call.1} parent=1 // pred_check
      _
    $region27: #{tpu_custom_call.1} parent=1 // pred_check_branch
      %110 = sbr.rel (0) target = $region29
    $region28: #{tpu_custom_call.1} parent=1 // pred_region
      %111 = dma.done [#allocation4], 256
    $region29: #{tpu_custom_call.1} parent=1 // pred_fallthru
      _
    %112 = vsyncpa [#allocation3], 1
    %113 = vsyncpa [#allocation6], 1
    %114 = vsyncpa [#allocation4], 1

</llo_original>
